<compile_context>
chip_gen: v5e
topology: v5e:2x2
jax: 0.10.0
libtpu: 0.0.40
codegen_flags: <defaults>
</compile_context>

<pallas_src>
import functools

import jax
import jax.numpy as jnp
from jax.experimental import pallas as pl
from jax.experimental.pallas import tpu as pltpu

WIN = 11
K1 = 0.01
K2 = 0.03
SSIM_WEIGHT = 0.7


def _l1ssim_kernel(dr_ref, bh_ref, bw_ref, x_ref, y_ref, out_ref, *,
                   imgs_per_step, n_valid, mask_tail, win, k1, k2):
    g = pl.program_id(0)

    bh = bh_ref[...]                      # (ho, H) exact 0/1 band matrix
    bw = bw_ref[...]                      # (W, wo) exact 0/1 band matrix
    np_ = win * win
    inv_np = 1.0 / float(np_)
    cov_norm = float(np_) / float(np_ - 1)

    def win_mean(q):
        # Two MXU matmuls (canonical (M,K)@(K,N) forms), f32 accumulate.
        t = jnp.dot(bh, q, preferred_element_type=jnp.float32)     # (ho, W)
        m = jnp.dot(t, bw, preferred_element_type=jnp.float32)     # (ho, wo)
        return m * inv_np

    ssim_part = jnp.float32(0.0)
    l1_part = jnp.float32(0.0)

    for b in range(imgs_per_step):        # static unroll over the batch slab
        idx = g * imgs_per_step + b
        dr = dr_ref[idx].astype(jnp.float32)
        inv_dr = 1.0 / dr                 # one scalar divide per image
        c1 = (k1 * dr) ** 2
        c2 = (k2 * dr) ** 2

        x = x_ref[b].astype(jnp.float32)  # (H, W)
        y = y_ref[b].astype(jnp.float32)

        ux = win_mean(x)
        uy = win_mean(y)
        uxx = win_mean(x * x)
        uyy = win_mean(y * y)
        uxy = win_mean(x * y)

        vx = cov_norm * (uxx - ux * ux)
        vy = cov_norm * (uyy - uy * uy)
        vxy = cov_norm * (uxy - ux * uy)

        a1 = 2.0 * ux * uy + c1
        a2 = 2.0 * vxy + c2
        b1 = ux * ux + uy * uy + c1
        b2 = vx + vy + c2
        # Exact divide kept (pl.reciprocal(approx=True) perturbs SSIM beyond
        # the 1e-4 validation tolerance).
        s = (a1 * a2) / (b1 * b2)

        ssim_img = jnp.sum(s)
        l1_img = inv_dr * jnp.sum(jnp.abs(x - y))

        if mask_tail:  # static: only emitted when the batch was padded
            valid = jnp.where(idx < n_valid, 1.0, 0.0).astype(jnp.float32)
            ssim_img = ssim_img * valid
            l1_img = l1_img * valid

        ssim_part = ssim_part + ssim_img
        l1_part = l1_part + l1_img

    # Per-step partial sums: sublane 0 = SSIM sum, sublane 1 = L1 sum.
    sub = jax.lax.broadcasted_iota(jnp.int32, (8, 128), 0)
    out_ref[0] = (jnp.where(sub == 0, ssim_part, 0.0).astype(jnp.float32)
                  + jnp.where(sub == 1, l1_part, 0.0).astype(jnp.float32))


def l1ssim(X, Y, data_range, *, win_size=WIN, k1=K1, k2=K2,
           ssim_weight=SSIM_WEIGHT):
    """Pallas implementation of L1SSIM.forward(X, Y, data_range, reduced=True)."""
    N, C, H, W = X.shape
    assert C == 1, "reference conv weight (1,1,win,win) requires C == 1"
    assert H >= win_size and W >= win_size, "image smaller than SSIM window"
    ho = H - win_size + 1
    wo = W - win_size + 1

    # Images per grid step, sized against a conservative VMEM budget
    # (~12 live (H,W) f32 intermediates + double-buffered input blocks).
    per_image_bytes = 18 * H * W * 4
    vmem_budget = 6 * 1024 * 1024
    B = int(max(1, min(N, 8, vmem_budget // per_image_bytes)))
    G = (N + B - 1) // B
    NP = G * B

    # Keep original dtype (cast happens inside the kernel); squeeze channel.
    x3 = X.reshape(N, H, W)
    y3 = Y.reshape(N, H, W)
    dr = data_range.astype(jnp.float32)
    if NP != N:
        pad = NP - N
        x3 = jnp.concatenate([x3, jnp.zeros((pad, H, W), x3.dtype)], axis=0)
        y3 = jnp.concatenate([y3, jnp.zeros((pad, H, W), y3.dtype)], axis=0)
        dr = jnp.concatenate([dr, jnp.ones((pad,), jnp.float32)], axis=0)

    # Exact 0/1 banded box-filter matrices (scale 1/win^2 applied in-kernel).
    r = jnp.arange(ho)[:, None]
    i = jnp.arange(H)[None, :]
    bh = ((i >= r) & (i < r + win_size)).astype(jnp.float32)    # (ho, H)
    j = jnp.arange(W)[:, None]
    c = jnp.arange(wo)[None, :]
    bw = ((j >= c) & (j < c + win_size)).astype(jnp.float32)    # (W, wo)

    kernel = functools.partial(
        _l1ssim_kernel, imgs_per_step=B, n_valid=N, mask_tail=(NP != N),
        win=win_size, k1=k1, k2=k2)

    parts = pl.pallas_call(
        kernel,
        out_shape=jax.ShapeDtypeStruct((G, 8, 128), jnp.float32),
        grid_spec=pltpu.PrefetchScalarGridSpec(
            num_scalar_prefetch=1,                 # data_range -> SMEM
            grid=(G,),
            in_specs=[
                pl.BlockSpec((ho, H), lambda g, dr_s: (0, 0)),       # Bh (resident)
                pl.BlockSpec((W, wo), lambda g, dr_s: (0, 0)),       # Bw (resident)
                pl.BlockSpec((B, H, W), lambda g, dr_s: (g, 0, 0)),  # X slab
                pl.BlockSpec((B, H, W), lambda g, dr_s: (g, 0, 0)),  # Y slab
            ],
            out_specs=pl.BlockSpec((1, 8, 128), lambda g, dr_s: (g, 0, 0)),
        ),
        compiler_params=pltpu.CompilerParams(
            dimension_semantics=("parallel",)),    # no carried state -> megacore OK
    )(dr, bh, bw, x3, y3)

    ssim_sum = jnp.sum(parts[:, 0, 0])
    l1_sum = jnp.sum(parts[:, 1, 0])
    s_mean = ssim_sum / float(N * ho * wo)
    l1_mean = l1_sum / float(N * H * W)
    return ssim_weight * (1.0 - s_mean) + (1.0 - ssim_weight) * l1_mean


def _reference_l1ssim(X, Y, data_range, *, win=WIN, k1=K1, k2=K2,
                      w_ssim=SSIM_WEIGHT):
    """Pure-JAX reference mirroring the PyTorch module."""
    w = jnp.ones((1, 1, win, win), jnp.float32) / float(win * win)
    conv = lambda a: jax.lax.conv_general_dilated(
        a, w, (1, 1), "VALID", dimension_numbers=("NCHW", "OIHW", "NCHW"),
        precision=jax.lax.Precision.HIGHEST)
    drb = data_range[:, None, None, None]
    C1 = (k1 * drb) ** 2
    C2 = (k2 * drb) ** 2
    ux, uy = conv(X), conv(Y)
    uxx, uyy, uxy = conv(X * X), conv(Y * Y), conv(X * Y)
    np_ = win * win
    cov = np_ / (np_ - 1)
    vx = cov * (uxx - ux * ux)
    vy = cov * (uyy - uy * uy)
    vxy = cov * (uxy - ux * uy)
    A1, A2 = 2 * ux * uy + C1, 2 * vxy + C2
    B1, B2 = ux ** 2 + uy ** 2 + C1, vx + vy + C2
    S = A1 * A2 / (B1 * B2)
    l_ssim = 1.0 - jnp.mean(S)
    l1 = jnp.mean(jnp.abs(X / drb - Y / drb))
    return l_ssim * w_ssim + (1.0 - w_ssim) * l1


if __name__ == "__main__":
    key = jax.random.PRNGKey(0)
    kx, ky = jax.random.split(key)
    N, C, H, W = 2, 1, 16, 16
    X = jax.random.uniform(kx, (N, C, H, W), jnp.float32)
    Y = jax.random.uniform(ky, (N, C, H, W), jnp.float32)
    data_range = jnp.array([1.0, 0.8], jnp.float32)

    loss = l1ssim(X, Y, data_range)
    loss = jax.block_until_ready(loss)

    ref = _reference_l1ssim(X, Y, data_range)
    assert jnp.allclose(loss, ref, rtol=1e-4, atol=1e-5), (loss, ref)

    print("KERNEL_OK")
</pallas_src>

<mosaic_0001>
module attributes {stable_mosaic.version = 11 : i64} {
  func.func @_l1ssim_kernel(%arg0: i32, %arg1: memref<2xf32, #tpu.memory_space<smem>>, %arg2: memref<6x16xf32, #tpu.memory_space<vmem>>, %arg3: memref<16x6xf32, #tpu.memory_space<vmem>>, %arg4: memref<2x16x16xf32, #tpu.memory_space<vmem>>, %arg5: memref<2x16x16xf32, #tpu.memory_space<vmem>>, %arg6: memref<1x8x128xf32, #tpu.memory_space<vmem>>) attributes {dimension_semantics = [#tpu.dimension_semantics<parallel>], iteration_bounds = array<i64: 1>, scalar_prefetch = 1 : i64, scratch_operands = 0 : i64, tpu.core_type = #tpu.core_type<tc>, window_params = [{pipeline_mode = #tpu.pipeline_mode<synchronous>, transform_indices = @transform_0, window_bounds = array<i64: 6, 16>}, {pipeline_mode = #tpu.pipeline_mode<synchronous>, transform_indices = @transform_1, window_bounds = array<i64: 16, 6>}, {transform_indices = @transform_2, window_bounds = array<i64: 2, 16, 16>}, {transform_indices = @transform_3, window_bounds = array<i64: 2, 16, 16>}, {transform_indices = @transform_4, window_bounds = array<i64: 1, 8, 128>}]} {
    %c0 = arith.constant 0 : index
    %c0_0 = arith.constant 0 : index
    %0 = vector.load %arg2[%c0, %c0_0] : memref<6x16xf32, #tpu.memory_space<vmem>>, vector<6x16xf32>
    %c0_1 = arith.constant 0 : index
    %c0_2 = arith.constant 0 : index
    %1 = vector.load %arg3[%c0_1, %c0_2] : memref<16x6xf32, #tpu.memory_space<vmem>>, vector<16x6xf32>
    %c2_i32 = arith.constant 2 : i32
    %2 = arith.muli %arg0, %c2_i32 : i32
    %c0_i32 = arith.constant 0 : i32
    %3 = arith.addi %2, %c0_i32 : i32
    %4 = arith.index_cast %3 : i32 to index
    %5 = memref.load %arg1[%4] : memref<2xf32, #tpu.memory_space<smem>>
    %cst = arith.constant 1.000000e+00 : f32
    %6 = arith.divf %cst, %5 : f32
    %cst_3 = arith.constant 0.00999999977 : f32
    %7 = arith.mulf %cst_3, %5 : f32
    %8 = arith.mulf %7, %7 : f32
    %cst_4 = arith.constant 3.000000e-02 : f32
    %9 = arith.mulf %cst_4, %5 : f32
    %10 = arith.mulf %9, %9 : f32
    %c0_5 = arith.constant 0 : index
    %c0_6 = arith.constant 0 : index
    %c0_7 = arith.constant 0 : index
    %11 = vector.load %arg4[%c0_5, %c0_6, %c0_7] : memref<2x16x16xf32, #tpu.memory_space<vmem>>, vector<1x16x16xf32>
    %12 = vector.shape_cast %11 : vector<1x16x16xf32> to vector<16x16xf32>
    %c0_8 = arith.constant 0 : index
    %c0_9 = arith.constant 0 : index
    %c0_10 = arith.constant 0 : index
    %13 = vector.load %arg5[%c0_8, %c0_9, %c0_10] : memref<2x16x16xf32, #tpu.memory_space<vmem>>, vector<1x16x16xf32>
    %14 = vector.shape_cast %13 : vector<1x16x16xf32> to vector<16x16xf32>
    %cst_11 = arith.constant dense<0.000000e+00> : vector<6x16xf32>
    %15 = tpu.matmul %0, %12, %cst_11 {dimension_numbers = #tpu.dot_dimension_numbers<[1], [0], [0], [1], [0, 0, 1, 1], [], []>} : vector<6x16xf32>, vector<16x16xf32>, vector<6x16xf32> -> vector<6x16xf32>
    %cst_12 = arith.constant dense<0.000000e+00> : vector<6x6xf32>
    %16 = tpu.matmul %15, %1, %cst_12 {dimension_numbers = #tpu.dot_dimension_numbers<[1], [0], [0], [1], [0, 0, 1, 1], [], []>} : vector<6x16xf32>, vector<16x6xf32>, vector<6x6xf32> -> vector<6x6xf32>
    %cst_13 = arith.constant 0.00826446246 : f32
    %17 = vector.broadcast %cst_13 : f32 to vector<6x6xf32>
    %18 = arith.mulf %16, %17 : vector<6x6xf32>
    %cst_14 = arith.constant dense<0.000000e+00> : vector<6x16xf32>
    %19 = tpu.matmul %0, %14, %cst_14 {dimension_numbers = #tpu.dot_dimension_numbers<[1], [0], [0], [1], [0, 0, 1, 1], [], []>} : vector<6x16xf32>, vector<16x16xf32>, vector<6x16xf32> -> vector<6x16xf32>
    %cst_15 = arith.constant dense<0.000000e+00> : vector<6x6xf32>
    %20 = tpu.matmul %19, %1, %cst_15 {dimension_numbers = #tpu.dot_dimension_numbers<[1], [0], [0], [1], [0, 0, 1, 1], [], []>} : vector<6x16xf32>, vector<16x6xf32>, vector<6x6xf32> -> vector<6x6xf32>
    %cst_16 = arith.constant 0.00826446246 : f32
    %21 = vector.broadcast %cst_16 : f32 to vector<6x6xf32>
    %22 = arith.mulf %20, %21 : vector<6x6xf32>
    %23 = arith.mulf %12, %12 : vector<16x16xf32>
    %cst_17 = arith.constant dense<0.000000e+00> : vector<6x16xf32>
    %24 = tpu.matmul %0, %23, %cst_17 {dimension_numbers = #tpu.dot_dimension_numbers<[1], [0], [0], [1], [0, 0, 1, 1], [], []>} : vector<6x16xf32>, vector<16x16xf32>, vector<6x16xf32> -> vector<6x16xf32>
    %cst_18 = arith.constant dense<0.000000e+00> : vector<6x6xf32>
    %25 = tpu.matmul %24, %1, %cst_18 {dimension_numbers = #tpu.dot_dimension_numbers<[1], [0], [0], [1], [0, 0, 1, 1], [], []>} : vector<6x16xf32>, vector<16x6xf32>, vector<6x6xf32> -> vector<6x6xf32>
    %cst_19 = arith.constant 0.00826446246 : f32
    %26 = vector.broadcast %cst_19 : f32 to vector<6x6xf32>
    %27 = arith.mulf %25, %26 : vector<6x6xf32>
    %28 = arith.mulf %14, %14 : vector<16x16xf32>
    %cst_20 = arith.constant dense<0.000000e+00> : vector<6x16xf32>
    %29 = tpu.matmul %0, %28, %cst_20 {dimension_numbers = #tpu.dot_dimension_numbers<[1], [0], [0], [1], [0, 0, 1, 1], [], []>} : vector<6x16xf32>, vector<16x16xf32>, vector<6x16xf32> -> vector<6x16xf32>
    %cst_21 = arith.constant dense<0.000000e+00> : vector<6x6xf32>
    %30 = tpu.matmul %29, %1, %cst_21 {dimension_numbers = #tpu.dot_dimension_numbers<[1], [0], [0], [1], [0, 0, 1, 1], [], []>} : vector<6x16xf32>, vector<16x6xf32>, vector<6x6xf32> -> vector<6x6xf32>
    %cst_22 = arith.constant 0.00826446246 : f32
    %31 = vector.broadcast %cst_22 : f32 to vector<6x6xf32>
    %32 = arith.mulf %30, %31 : vector<6x6xf32>
    %33 = arith.mulf %12, %14 : vector<16x16xf32>
    %cst_23 = arith.constant dense<0.000000e+00> : vector<6x16xf32>
    %34 = tpu.matmul %0, %33, %cst_23 {dimension_numbers = #tpu.dot_dimension_numbers<[1], [0], [0], [1], [0, 0, 1, 1], [], []>} : vector<6x16xf32>, vector<16x16xf32>, vector<6x16xf32> -> vector<6x16xf32>
    %cst_24 = arith.constant dense<0.000000e+00> : vector<6x6xf32>
    %35 = tpu.matmul %34, %1, %cst_24 {dimension_numbers = #tpu.dot_dimension_numbers<[1], [0], [0], [1], [0, 0, 1, 1], [], []>} : vector<6x16xf32>, vector<16x6xf32>, vector<6x6xf32> -> vector<6x6xf32>
    %cst_25 = arith.constant 0.00826446246 : f32
    %36 = vector.broadcast %cst_25 : f32 to vector<6x6xf32>
    %37 = arith.mulf %35, %36 : vector<6x6xf32>
    %38 = arith.mulf %18, %18 : vector<6x6xf32>
    %39 = arith.subf %27, %38 : vector<6x6xf32>
    %cst_26 = arith.constant 1.00833333 : f32
    %40 = vector.broadcast %cst_26 : f32 to vector<6x6xf32>
    %41 = arith.mulf %40, %39 : vector<6x6xf32>
    %42 = arith.mulf %22, %22 : vector<6x6xf32>
    %43 = arith.subf %32, %42 : vector<6x6xf32>
    %cst_27 = arith.constant 1.00833333 : f32
    %44 = vector.broadcast %cst_27 : f32 to vector<6x6xf32>
    %45 = arith.mulf %44, %43 : vector<6x6xf32>
    %46 = arith.mulf %18, %22 : vector<6x6xf32>
    %47 = arith.subf %37, %46 : vector<6x6xf32>
    %cst_28 = arith.constant 1.00833333 : f32
    %48 = vector.broadcast %cst_28 : f32 to vector<6x6xf32>
    %49 = arith.mulf %48, %47 : vector<6x6xf32>
    %cst_29 = arith.constant 2.000000e+00 : f32
    %50 = vector.broadcast %cst_29 : f32 to vector<6x6xf32>
    %51 = arith.mulf %50, %18 : vector<6x6xf32>
    %52 = arith.mulf %51, %22 : vector<6x6xf32>
    %53 = vector.broadcast %8 : f32 to vector<6x6xf32>
    %54 = arith.addf %52, %53 : vector<6x6xf32>
    %cst_30 = arith.constant 2.000000e+00 : f32
    %55 = vector.broadcast %cst_30 : f32 to vector<6x6xf32>
    %56 = arith.mulf %55, %49 : vector<6x6xf32>
    %57 = vector.broadcast %10 : f32 to vector<6x6xf32>
    %58 = arith.addf %56, %57 : vector<6x6xf32>
    %59 = arith.mulf %18, %18 : vector<6x6xf32>
    %60 = arith.mulf %22, %22 : vector<6x6xf32>
    %61 = arith.addf %59, %60 : vector<6x6xf32>
    %62 = vector.broadcast %8 : f32 to vector<6x6xf32>
    %63 = arith.addf %61, %62 : vector<6x6xf32>
    %64 = arith.addf %41, %45 : vector<6x6xf32>
    %65 = vector.broadcast %10 : f32 to vector<6x6xf32>
    %66 = arith.addf %64, %65 : vector<6x6xf32>
    %67 = arith.mulf %54, %58 : vector<6x6xf32>
    %68 = arith.mulf %63, %66 : vector<6x6xf32>
    %69 = arith.divf %67, %68 : vector<6x6xf32>
    %70 = vector.shape_cast %69 : vector<6x6xf32> to vector<1x6x6xf32>
    %cst_31 = arith.constant dense<0.000000e+00> : vector<1xf32>
    %71 = vector.multi_reduction <add>, %70, %cst_31 [1, 2] : vector<1x6x6xf32> to vector<1xf32>
    %72 = vector.shape_cast %71 : vector<1xf32> to vector<1x1x1xf32>
    %73 = vector.extract %72[0, 0, 0] : f32 from vector<1x1x1xf32>
    %74 = arith.subf %12, %14 : vector<16x16xf32>
    %75 = math.absf %74 : vector<16x16xf32>
    %76 = vector.shape_cast %75 : vector<16x16xf32> to vector<1x16x16xf32>
    %cst_32 = arith.constant dense<0.000000e+00> : vector<1xf32>
    %77 = vector.multi_reduction <add>, %76, %cst_32 [1, 2] : vector<1x16x16xf32> to vector<1xf32>
    %78 = vector.shape_cast %77 : vector<1xf32> to vector<1x1x1xf32>
    %79 = vector.extract %78[0, 0, 0] : f32 from vector<1x1x1xf32>
    %80 = arith.mulf %6, %79 : f32
    %cst_33 = arith.constant 0.000000e+00 : f32
    %81 = arith.addf %cst_33, %73 : f32
    %cst_34 = arith.constant 0.000000e+00 : f32
    %82 = arith.addf %cst_34, %80 : f32
    %c2_i32_35 = arith.constant 2 : i32
    %83 = arith.muli %arg0, %c2_i32_35 : i32
    %c1_i32 = arith.constant 1 : i32
    %84 = arith.addi %83, %c1_i32 : i32
    %85 = arith.index_cast %84 : i32 to index
    %86 = memref.load %arg1[%85] : memref<2xf32, #tpu.memory_space<smem>>
    %cst_36 = arith.constant 1.000000e+00 : f32
    %87 = arith.divf %cst_36, %86 : f32
    %cst_37 = arith.constant 0.00999999977 : f32
    %88 = arith.mulf %cst_37, %86 : f32
    %89 = arith.mulf %88, %88 : f32
    %cst_38 = arith.constant 3.000000e-02 : f32
    %90 = arith.mulf %cst_38, %86 : f32
    %91 = arith.mulf %90, %90 : f32
    %c1 = arith.constant 1 : index
    %c0_39 = arith.constant 0 : index
    %c0_40 = arith.constant 0 : index
    %92 = vector.load %arg4[%c1, %c0_39, %c0_40] : memref<2x16x16xf32, #tpu.memory_space<vmem>>, vector<1x16x16xf32>
    %93 = vector.shape_cast %92 : vector<1x16x16xf32> to vector<16x16xf32>
    %c1_41 = arith.constant 1 : index
    %c0_42 = arith.constant 0 : index
    %c0_43 = arith.constant 0 : index
    %94 = vector.load %arg5[%c1_41, %c0_42, %c0_43] : memref<2x16x16xf32, #tpu.memory_space<vmem>>, vector<1x16x16xf32>
    %95 = vector.shape_cast %94 : vector<1x16x16xf32> to vector<16x16xf32>
    %cst_44 = arith.constant dense<0.000000e+00> : vector<6x16xf32>
    %96 = tpu.matmul %0, %93, %cst_44 {dimension_numbers = #tpu.dot_dimension_numbers<[1], [0], [0], [1], [0, 0, 1, 1], [], []>} : vector<6x16xf32>, vector<16x16xf32>, vector<6x16xf32> -> vector<6x16xf32>
    %cst_45 = arith.constant dense<0.000000e+00> : vector<6x6xf32>
    %97 = tpu.matmul %96, %1, %cst_45 {dimension_numbers = #tpu.dot_dimension_numbers<[1], [0], [0], [1], [0, 0, 1, 1], [], []>} : vector<6x16xf32>, vector<16x6xf32>, vector<6x6xf32> -> vector<6x6xf32>
    %cst_46 = arith.constant 0.00826446246 : f32
    %98 = vector.broadcast %cst_46 : f32 to vector<6x6xf32>
    %99 = arith.mulf %97, %98 : vector<6x6xf32>
    %cst_47 = arith.constant dense<0.000000e+00> : vector<6x16xf32>
    %100 = tpu.matmul %0, %95, %cst_47 {dimension_numbers = #tpu.dot_dimension_numbers<[1], [0], [0], [1], [0, 0, 1, 1], [], []>} : vector<6x16xf32>, vector<16x16xf32>, vector<6x16xf32> -> vector<6x16xf32>
    %cst_48 = arith.constant dense<0.000000e+00> : vector<6x6xf32>
    %101 = tpu.matmul %100, %1, %cst_48 {dimension_numbers = #tpu.dot_dimension_numbers<[1], [0], [0], [1], [0, 0, 1, 1], [], []>} : vector<6x16xf32>, vector<16x6xf32>, vector<6x6xf32> -> vector<6x6xf32>
    %cst_49 = arith.constant 0.00826446246 : f32
    %102 = vector.broadcast %cst_49 : f32 to vector<6x6xf32>
    %103 = arith.mulf %101, %102 : vector<6x6xf32>
    %104 = arith.mulf %93, %93 : vector<16x16xf32>
    %cst_50 = arith.constant dense<0.000000e+00> : vector<6x16xf32>
    %105 = tpu.matmul %0, %104, %cst_50 {dimension_numbers = #tpu.dot_dimension_numbers<[1], [0], [0], [1], [0, 0, 1, 1], [], []>} : vector<6x16xf32>, vector<16x16xf32>, vector<6x16xf32> -> vector<6x16xf32>
    %cst_51 = arith.constant dense<0.000000e+00> : vector<6x6xf32>
    %106 = tpu.matmul %105, %1, %cst_51 {dimension_numbers = #tpu.dot_dimension_numbers<[1], [0], [0], [1], [0, 0, 1, 1], [], []>} : vector<6x16xf32>, vector<16x6xf32>, vector<6x6xf32> -> vector<6x6xf32>
    %cst_52 = arith.constant 0.00826446246 : f32
    %107 = vector.broadcast %cst_52 : f32 to vector<6x6xf32>
    %108 = arith.mulf %106, %107 : vector<6x6xf32>
    %109 = arith.mulf %95, %95 : vector<16x16xf32>
    %cst_53 = arith.constant dense<0.000000e+00> : vector<6x16xf32>
    %110 = tpu.matmul %0, %109, %cst_53 {dimension_numbers = #tpu.dot_dimension_numbers<[1], [0], [0], [1], [0, 0, 1, 1], [], []>} : vector<6x16xf32>, vector<16x16xf32>, vector<6x16xf32> -> vector<6x16xf32>
    %cst_54 = arith.constant dense<0.000000e+00> : vector<6x6xf32>
    %111 = tpu.matmul %110, %1, %cst_54 {dimension_numbers = #tpu.dot_dimension_numbers<[1], [0], [0], [1], [0, 0, 1, 1], [], []>} : vector<6x16xf32>, vector<16x6xf32>, vector<6x6xf32> -> vector<6x6xf32>
    %cst_55 = arith.constant 0.00826446246 : f32
    %112 = vector.broadcast %cst_55 : f32 to vector<6x6xf32>
    %113 = arith.mulf %111, %112 : vector<6x6xf32>
    %114 = arith.mulf %93, %95 : vector<16x16xf32>
    %cst_56 = arith.constant dense<0.000000e+00> : vector<6x16xf32>
    %115 = tpu.matmul %0, %114, %cst_56 {dimension_numbers = #tpu.dot_dimension_numbers<[1], [0], [0], [1], [0, 0, 1, 1], [], []>} : vector<6x16xf32>, vector<16x16xf32>, vector<6x16xf32> -> vector<6x16xf32>
    %cst_57 = arith.constant dense<0.000000e+00> : vector<6x6xf32>
    %116 = tpu.matmul %115, %1, %cst_57 {dimension_numbers = #tpu.dot_dimension_numbers<[1], [0], [0], [1], [0, 0, 1, 1], [], []>} : vector<6x16xf32>, vector<16x6xf32>, vector<6x6xf32> -> vector<6x6xf32>
    %cst_58 = arith.constant 0.00826446246 : f32
    %117 = vector.broadcast %cst_58 : f32 to vector<6x6xf32>
    %118 = arith.mulf %116, %117 : vector<6x6xf32>
    %119 = arith.mulf %99, %99 : vector<6x6xf32>
    %120 = arith.subf %108, %119 : vector<6x6xf32>
    %cst_59 = arith.constant 1.00833333 : f32
    %121 = vector.broadcast %cst_59 : f32 to vector<6x6xf32>
    %122 = arith.mulf %121, %120 : vector<6x6xf32>
    %123 = arith.mulf %103, %103 : vector<6x6xf32>
    %124 = arith.subf %113, %123 : vector<6x6xf32>
    %cst_60 = arith.constant 1.00833333 : f32
    %125 = vector.broadcast %cst_60 : f32 to vector<6x6xf32>
    %126 = arith.mulf %125, %124 : vector<6x6xf32>
    %127 = arith.mulf %99, %103 : vector<6x6xf32>
    %128 = arith.subf %118, %127 : vector<6x6xf32>
    %cst_61 = arith.constant 1.00833333 : f32
    %129 = vector.broadcast %cst_61 : f32 to vector<6x6xf32>
    %130 = arith.mulf %129, %128 : vector<6x6xf32>
    %cst_62 = arith.constant 2.000000e+00 : f32
    %131 = vector.broadcast %cst_62 : f32 to vector<6x6xf32>
    %132 = arith.mulf %131, %99 : vector<6x6xf32>
    %133 = arith.mulf %132, %103 : vector<6x6xf32>
    %134 = vector.broadcast %89 : f32 to vector<6x6xf32>
    %135 = arith.addf %133, %134 : vector<6x6xf32>
    %cst_63 = arith.constant 2.000000e+00 : f32
    %136 = vector.broadcast %cst_63 : f32 to vector<6x6xf32>
    %137 = arith.mulf %136, %130 : vector<6x6xf32>
    %138 = vector.broadcast %91 : f32 to vector<6x6xf32>
    %139 = arith.addf %137, %138 : vector<6x6xf32>
    %140 = arith.mulf %99, %99 : vector<6x6xf32>
    %141 = arith.mulf %103, %103 : vector<6x6xf32>
    %142 = arith.addf %140, %141 : vector<6x6xf32>
    %143 = vector.broadcast %89 : f32 to vector<6x6xf32>
    %144 = arith.addf %142, %143 : vector<6x6xf32>
    %145 = arith.addf %122, %126 : vector<6x6xf32>
    %146 = vector.broadcast %91 : f32 to vector<6x6xf32>
    %147 = arith.addf %145, %146 : vector<6x6xf32>
    %148 = arith.mulf %135, %139 : vector<6x6xf32>
    %149 = arith.mulf %144, %147 : vector<6x6xf32>
    %150 = arith.divf %148, %149 : vector<6x6xf32>
    %151 = vector.shape_cast %150 : vector<6x6xf32> to vector<1x6x6xf32>
    %cst_64 = arith.constant dense<0.000000e+00> : vector<1xf32>
    %152 = vector.multi_reduction <add>, %151, %cst_64 [1, 2] : vector<1x6x6xf32> to vector<1xf32>
    %153 = vector.shape_cast %152 : vector<1xf32> to vector<1x1x1xf32>
    %154 = vector.extract %153[0, 0, 0] : f32 from vector<1x1x1xf32>
    %155 = arith.subf %93, %95 : vector<16x16xf32>
    %156 = math.absf %155 : vector<16x16xf32>
    %157 = vector.shape_cast %156 : vector<16x16xf32> to vector<1x16x16xf32>
    %cst_65 = arith.constant dense<0.000000e+00> : vector<1xf32>
    %158 = vector.multi_reduction <add>, %157, %cst_65 [1, 2] : vector<1x16x16xf32> to vector<1xf32>
    %159 = vector.shape_cast %158 : vector<1xf32> to vector<1x1x1xf32>
    %160 = vector.extract %159[0, 0, 0] : f32 from vector<1x1x1xf32>
    %161 = arith.mulf %87, %160 : f32
    %162 = arith.addf %81, %154 : f32
    %163 = arith.addf %82, %161 : f32
    %164 = tpu.iota {dimensions = array<i32: 0>} : vector<8x128xi32>
    %c0_i32_66 = arith.constant 0 : i32
    %165 = vector.broadcast %c0_i32_66 : i32 to vector<8x128xi32>
    %166 = arith.cmpi eq, %164, %165 : vector<8x128xi32>
    %cst_67 = arith.constant 0.000000e+00 : f32
    %167 = vector.broadcast %162 : f32 to vector<8x128xf32>
    %168 = vector.broadcast %cst_67 : f32 to vector<8x128xf32>
    %169 = arith.select %166, %167, %168 : vector<8x128xi1>, vector<8x128xf32>
    %c1_i32_68 = arith.constant 1 : i32
    %170 = vector.broadcast %c1_i32_68 : i32 to vector<8x128xi32>
    %171 = arith.cmpi eq, %164, %170 : vector<8x128xi32>
    %cst_69 = arith.constant 0.000000e+00 : f32
    %172 = vector.broadcast %163 : f32 to vector<8x128xf32>
    %173 = vector.broadcast %cst_69 : f32 to vector<8x128xf32>
    %174 = arith.select %171, %172, %173 : vector<8x128xi1>, vector<8x128xf32>
    %175 = arith.addf %169, %174 : vector<8x128xf32>
    %c0_70 = arith.constant 0 : index
    %c0_71 = arith.constant 0 : index
    %c0_72 = arith.constant 0 : index
    %176 = vector.load %arg6[%c0_70, %c0_71, %c0_72] : memref<1x8x128xf32, #tpu.memory_space<vmem>>, vector<1x8x128xf32>
    %177 = vector.shape_cast %176 : vector<1x8x128xf32> to vector<8x128xf32>
    %178 = vector.shape_cast %175 : vector<8x128xf32> to vector<1x8x128xf32>
    tpu.vector_store %arg6[%c0_70, %c0_71, %c0_72], %178 {strides = array<i32>} : memref<1x8x128xf32, #tpu.memory_space<vmem>>, vector<1x8x128xf32>,
    return
  }
  func.func @transform_0(%arg0: i32, %arg1: memref<2xf32, #tpu.memory_space<smem>>) -> (i32, i32) {
    %c0_i32 = arith.constant 0 : i32
    %c0_i32_0 = arith.constant 0 : i32
    %c0_i32_1 = arith.constant 0 : i32
    return %c0_i32, %c0_i32_0 : i32, i32
  }
  func.func @transform_1(%arg0: i32, %arg1: memref<2xf32, #tpu.memory_space<smem>>) -> (i32, i32) {
    %c0_i32 = arith.constant 0 : i32
    %c0_i32_0 = arith.constant 0 : i32
    %c0_i32_1 = arith.constant 0 : i32
    return %c0_i32, %c0_i32_0 : i32, i32
  }
  func.func @transform_2(%arg0: i32, %arg1: memref<2xf32, #tpu.memory_space<smem>>) -> (i32, i32, i32) {
    %c0_i32 = arith.constant 0 : i32
    %c0_i32_0 = arith.constant 0 : i32
    %c0_i32_1 = arith.constant 0 : i32
    return %arg0, %c0_i32, %c0_i32_0 : i32, i32, i32
  }
  func.func @transform_3(%arg0: i32, %arg1: memref<2xf32, #tpu.memory_space<smem>>) -> (i32, i32, i32) {
    %c0_i32 = arith.constant 0 : i32
    %c0_i32_0 = arith.constant 0 : i32
    %c0_i32_1 = arith.constant 0 : i32
    return %arg0, %c0_i32, %c0_i32_0 : i32, i32, i32
  }
  func.func @transform_4(%arg0: i32, %arg1: memref<2xf32, #tpu.memory_space<smem>>) -> (i32, i32, i32) {
    %c0_i32 = arith.constant 0 : i32
    %c0_i32_0 = arith.constant 0 : i32
    %c0_i32_1 = arith.constant 0 : i32
    return %arg0, %c0_i32, %c0_i32_0 : i32, i32, i32
  }
}

</mosaic_0001>

<llo_original>
// kernel: tpu_custom_call.1
$region0: #{tpu_custom_call.1}
  #allocation0 [shape = 'u32[]', space=smem, size = 0x4, offset = 0x4, fixed_abs, tag = 'smem constant byte address 0x4 - core index']
  #allocation1 [shape = 'u32[72,128]{1,0:T(1,128)}', space=vmem, size = 0x9000, scoped, tag = 'internal scratch']
  #allocation2 [shape = 's32[1]{0}', space=sflag, size = 0x4, scoped, tag = 'scoped memory for tpu_custom_call.1']
  #allocation3 [shape = 'u8[512]{0}', space=smem, size = 0x200, scoped, tag = 'prefetched SMEM operand 0']
  %s0 = inlined_call_operand.vmem [shape: f32[2], index: 0, kind: input, shape index: {}]
  %s1 = inlined_call_operand.vmem [shape: f32[6,16], index: 1, kind: input, shape index: {}]
  %s2 = inlined_call_operand.vmem [shape: f32[16,6], index: 2, kind: input, shape index: {}]
  %s3 = inlined_call_operand.hbm [shape: f32[2,16,16], index: 3, kind: input, shape index: {}]
  %s4 = inlined_call_operand.hbm [shape: f32[2,16,16], index: 4, kind: input, shape index: {}]
  %s5 = inlined_call_operand.hbm [shape: f32[1,8,128], index: 5, kind: output, shape index: {}]
  %s6 = sld [smem:[#allocation0]]
  $region34: #{tpu_custom_call.1} parent=0
    _
  %s8 = ssub.s32 1, %s6
  %s9 = scalar_select 0, %s8, %s6
  %s11 = sshll.u32 %s0, 4
  %s12 = int_to_ptr.vmem [resolvable:$true] %s11
  %14 = dma.vmem_to_smem %s12, 16, [#allocation3], [#allocation2]
  %16 = dma.done [#allocation2], 16
  %17 = sfence
  $region1: #{tpu_custom_call.1} parent=0
    #allocation4 [shape = 'u8[16384]{0}', space=vmem, size = 0x4000, scoped, tag = 'input window, operand 3, single buffered']
    #allocation5 [shape = 's32[1]{0}', space=sflag, size = 0x4, scoped, tag = 'scoped memory for tpu_custom_call.1']
    #allocation6 [shape = 's32[1]{0}', space=sflag, size = 0x4, scoped, tag = 'scoped memory for tpu_custom_call.1']
    #allocation7 [shape = 'u8[16384]{0}', space=vmem, size = 0x4000, scoped, tag = 'input window, operand 4, single buffered']
    #allocation8 [shape = 's32[1]{0}', space=sflag, size = 0x4, scoped, tag = 'scoped memory for tpu_custom_call.1']
    #allocation9 [shape = 'u8[4096]{0}', space=vmem, size = 0x1000, scoped, tag = 'output window, operand 0, single buffered']
    %18 = vsyncpa [#allocation5], 0
    %19 = vsyncpa [#allocation8], 0
    %20 = vsyncpa [#allocation6], 0
    // Predicated region
    $region2: #{tpu_custom_call.1} parent=1 // pred_check
      _
    $region3: #{tpu_custom_call.1} parent=1 // pred_check_branch
      %22 = sbr.rel (0) target = $region5
    $region4: #{tpu_custom_call.1} parent=1 // pred_region
      _
    $region5: #{tpu_custom_call.1} parent=1 // pred_fallthru
      _
    // Predicated region
    $region6: #{tpu_custom_call.1} parent=1 // pred_check
      _
    $region7: #{tpu_custom_call.1} parent=1 // pred_check_branch
      %24 = sbr.rel (0) target = $region9
    $region8: #{tpu_custom_call.1} parent=1 // pred_region
      _
    $region9: #{tpu_custom_call.1} parent=1 // pred_fallthru
      _
    // Predicated region
    $region10: #{tpu_custom_call.1} parent=1 // pred_check
      _
    $region11: #{tpu_custom_call.1} parent=1 // pred_check_branch
      %26 = sbr.rel (0) target = $region13
    $region12: #{tpu_custom_call.1} parent=1 // pred_region
      %28 = vsyncadd [#allocation5], 0
      %s29 = sshll.u32 %s3, 4
      %s30 = int_to_ptr.hbm [resolvable:$true] %s29
      %s31 = sshll.u32 [#allocation4], 4
      %s32 = int_to_ptr.vmem [resolvable:$true] %s31
      %37 = dma.hbm_to_vmem [thread:$0]  %s30, 512, %s32, [#allocation5], 128, 128, 8
    $region13: #{tpu_custom_call.1} parent=1 // pred_fallthru
      _
    // Predicated region
    $region14: #{tpu_custom_call.1} parent=1 // pred_check
      _
    $region15: #{tpu_custom_call.1} parent=1 // pred_check_branch
      %39 = sbr.rel (0) target = $region17
    $region16: #{tpu_custom_call.1} parent=1 // pred_region
      %41 = vsyncadd [#allocation8], 0
      %s42 = sshll.u32 %s4, 4
      %s43 = int_to_ptr.hbm [resolvable:$true] %s42
      %s44 = sshll.u32 [#allocation7], 4
      %s45 = int_to_ptr.vmem [resolvable:$true] %s44
      %50 = dma.hbm_to_vmem [thread:$0]  %s43, 512, %s45, [#allocation8], 128, 128, 8
    $region17: #{tpu_custom_call.1} parent=1 // pred_fallthru
      _
    // Predicated region
    $region18: #{tpu_custom_call.1} parent=1 // pred_check
      _
    $region19: #{tpu_custom_call.1} parent=1 // pred_check_branch
      %52 = sbr.rel (0) target = $region21
    $region20: #{tpu_custom_call.1} parent=1 // pred_region
      %54 = dma.done [#allocation5], 512
    $region21: #{tpu_custom_call.1} parent=1 // pred_fallthru
      _
    // Predicated region
    $region22: #{tpu_custom_call.1} parent=1 // pred_check
      _
    $region23: #{tpu_custom_call.1} parent=1 // pred_check_branch
      %56 = sbr.rel (0) target = $region25
    $region24: #{tpu_custom_call.1} parent=1 // pred_region
      %58 = dma.done [#allocation8], 512
    $region25: #{tpu_custom_call.1} parent=1 // pred_fallthru
      _
    %v59 = vld [vmem:[%s1] sm:$0x3f]
    %v60 = vld [vmem:[%s2] sm:$0xff]
    %v61 = vld [vmem:[%s2 + $0x8] sm:$0xff]
    %s62 = smul.u32 0, 2
    %s63 = sld [smem:[#allocation3 + %s62]]
    %v64 = vstv %s63
    %v65 = vrcp.pop %v64
    %v66 = vmul.f32 %v64, %v65
    %v67 = vsub.f32 1.0, %v66
    %v68 = vmul.f32 %v65, %v67
    %v69 = vadd.f32 %v65, %v68
    %vm70 = vweird.f32 %v64
    %vm71 = vweird.f32 %v65
    %vm72 = vmor %vm70, %vm71
    %v73 = vsel %vm72, %v65, %v69
    %v74 = vand.u32 2147483647, %v64
    %vm75 = vcmp.eq.f32.partialorder %v74, 8.507059e+37
    %v76 = vand.u32 %v64, 2147483648
    %v77 = vor.u32 1.1754944e-38, %v76
    %v78 = vsel %vm75, %v77, %v73
    %s79 = vtos %v78
    %s80 = smul.f32 %s63, 0.01
    %s81 = smul.f32 %s80, %s80
    %s82 = smul.f32 %s63, 0.03
    %s83 = smul.f32 %s82, %s82
    %v84 = vld [vmem:[#allocation4] sm:$0xff]
    %v85 = vld [vmem:[#allocation4 + $0x8] sm:$0xff]
    %v86 = vld [vmem:[#allocation7] sm:$0xff]
    %v87 = vld [vmem:[#allocation7 + $0x8] sm:$0xff]
    %vm88 = vcmask 130048
    %v90 = vsel %vm88, %v59, 0
    %92 = vmatpush.msra.mxu0 0.0
    %93 = vmatpush.msra.mxu0 0.0
    %94 = vmatpush.msra.mxu0 0.0
    %95 = vmatpush.msra.mxu0 0.0
    %96 = vmatpush.msra.mxu0 0.0
    %97 = vmatpush.msra.mxu0 0.0
    %98 = vmatpush.msra.mxu0 0.0
    %99 = vmatpush.msra.mxu0 0.0
    %100 = vmatpush.msra.mxu0 0.0
    %101 = vmatpush.msra.mxu0 0.0
    %102 = vmatpush.msra.mxu0 0.0
    %103 = vmatpush.msra.mxu0 0.0
    %104 = vmatpush.msra.mxu0 0.0
    %105 = vmatpush.msra.mxu0 0.0
    %106 = vmatpush.msra.mxu0 %v85
    %107 = vmatpush.msra.mxu0 %v84
    %108 = vmatmul.f32.gmra.mxu0 %v90
    %v109 = vpop.f32.mrf.mxu0
    %v110 = vadd.f32 0.0, %v109
    %111 = vdwg.mxu0
    %v113 = vsel %vm88, %v110, 0
    %115 = vmatpush.msra.mxu0 0.0
    %116 = vmatpush.msra.mxu0 0.0
    %117 = vmatpush.msra.mxu0 0.0
    %118 = vmatpush.msra.mxu0 0.0
    %119 = vmatpush.msra.mxu0 0.0
    %120 = vmatpush.msra.mxu0 0.0
    %121 = vmatpush.msra.mxu0 0.0
    %122 = vmatpush.msra.mxu0 0.0
    %123 = vmatpush.msra.mxu0 0.0
    %124 = vmatpush.msra.mxu0 0.0
    %125 = vmatpush.msra.mxu0 0.0
    %126 = vmatpush.msra.mxu0 0.0
    %127 = vmatpush.msra.mxu0 0.0
    %128 = vmatpush.msra.mxu0 0.0
    %129 = vmatpush.msra.mxu0 %v61
    %130 = vmatpush.msra.mxu0 %v60
    %131 = vmatmul.f32.gmra.mxu0 %v113
    %v132 = vpop.f32.mrf.mxu0
    %v133 = vadd.f32 0.0, %v132
    %134 = vdwg.mxu0
    %v135 = vmul.f32 %v133, 0.008264462
    %136 = vmatpush.msra.mxu0 0.0
    %137 = vmatpush.msra.mxu0 0.0
    %138 = vmatpush.msra.mxu0 0.0
    %139 = vmatpush.msra.mxu0 0.0
    %140 = vmatpush.msra.mxu0 0.0
    %141 = vmatpush.msra.mxu0 0.0
    %142 = vmatpush.msra.mxu0 0.0
    %143 = vmatpush.msra.mxu0 0.0
    %144 = vmatpush.msra.mxu0 0.0
    %145 = vmatpush.msra.mxu0 0.0
    %146 = vmatpush.msra.mxu0 0.0
    %147 = vmatpush.msra.mxu0 0.0
    %148 = vmatpush.msra.mxu0 0.0
    %149 = vmatpush.msra.mxu0 0.0
    %150 = vmatpush.msra.mxu0 %v87
    %151 = vmatpush.msra.mxu0 %v86
    %152 = vmatmul.f32.gmra.mxu0 %v90
    %v153 = vpop.f32.mrf.mxu0
    %v154 = vadd.f32 0.0, %v153
    %155 = vdwg.mxu0
    %v157 = vsel %vm88, %v154, 0
    %159 = vmatpush.msra.mxu0 0.0
    %160 = vmatpush.msra.mxu0 0.0
    %161 = vmatpush.msra.mxu0 0.0
    %162 = vmatpush.msra.mxu0 0.0
    %163 = vmatpush.msra.mxu0 0.0
    %164 = vmatpush.msra.mxu0 0.0
    %165 = vmatpush.msra.mxu0 0.0
    %166 = vmatpush.msra.mxu0 0.0
    %167 = vmatpush.msra.mxu0 0.0
    %168 = vmatpush.msra.mxu0 0.0
    %169 = vmatpush.msra.mxu0 0.0
    %170 = vmatpush.msra.mxu0 0.0
    %171 = vmatpush.msra.mxu0 0.0
    %172 = vmatpush.msra.mxu0 0.0
    %173 = vmatpush.msra.mxu0 %v61
    %174 = vmatpush.msra.mxu0 %v60
    %175 = vmatmul.f32.gmra.mxu0 %v157
    %v176 = vpop.f32.mrf.mxu0
    %v177 = vadd.f32 0.0, %v176
    %178 = vdwg.mxu0
    %v179 = vmul.f32 %v177, 0.008264462
    %v180 = vmul.f32 %v84, %v84
    %v181 = vmul.f32 %v85, %v85
    %182 = vmatpush.msra.mxu0 0.0
    %183 = vmatpush.msra.mxu0 0.0
    %184 = vmatpush.msra.mxu0 0.0
    %185 = vmatpush.msra.mxu0 0.0
    %186 = vmatpush.msra.mxu0 0.0
    %187 = vmatpush.msra.mxu0 0.0
    %188 = vmatpush.msra.mxu0 0.0
    %189 = vmatpush.msra.mxu0 0.0
    %190 = vmatpush.msra.mxu0 0.0
    %191 = vmatpush.msra.mxu0 0.0
    %192 = vmatpush.msra.mxu0 0.0
    %193 = vmatpush.msra.mxu0 0.0
    %194 = vmatpush.msra.mxu0 0.0
    %195 = vmatpush.msra.mxu0 0.0
    %196 = vmatpush.msra.mxu0 %v181
    %197 = vmatpush.msra.mxu0 %v180
    %198 = vmatmul.f32.gmra.mxu0 %v90
    %v199 = vpop.f32.mrf.mxu0
    %v200 = vadd.f32 0.0, %v199
    %201 = vdwg.mxu0
    %v203 = vsel %vm88, %v200, 0
    %205 = vmatpush.msra.mxu0 0.0
    %206 = vmatpush.msra.mxu0 0.0
    %207 = vmatpush.msra.mxu0 0.0
    %208 = vmatpush.msra.mxu0 0.0
    %209 = vmatpush.msra.mxu0 0.0
    %210 = vmatpush.msra.mxu0 0.0
    %211 = vmatpush.msra.mxu0 0.0
    %212 = vmatpush.msra.mxu0 0.0
    %213 = vmatpush.msra.mxu0 0.0
    %214 = vmatpush.msra.mxu0 0.0
    %215 = vmatpush.msra.mxu0 0.0
    %216 = vmatpush.msra.mxu0 0.0
    %217 = vmatpush.msra.mxu0 0.0
    %218 = vmatpush.msra.mxu0 0.0
    %219 = vmatpush.msra.mxu0 %v61
    %220 = vmatpush.msra.mxu0 %v60
    %221 = vmatmul.f32.gmra.mxu0 %v203
    %v222 = vpop.f32.mrf.mxu0
    %v223 = vadd.f32 0.0, %v222
    %224 = vdwg.mxu0
    %v225 = vmul.f32 %v223, 0.008264462
    %v226 = vmul.f32 %v86, %v86
    %v227 = vmul.f32 %v87, %v87
    %228 = vmatpush.msra.mxu0 0.0
    %229 = vmatpush.msra.mxu0 0.0
    %230 = vmatpush.msra.mxu0 0.0
    %231 = vmatpush.msra.mxu0 0.0
    %232 = vmatpush.msra.mxu0 0.0
    %233 = vmatpush.msra.mxu0 0.0
    %234 = vmatpush.msra.mxu0 0.0
    %235 = vmatpush.msra.mxu0 0.0
    %236 = vmatpush.msra.mxu0 0.0
    %237 = vmatpush.msra.mxu0 0.0
    %238 = vmatpush.msra.mxu0 0.0
    %239 = vmatpush.msra.mxu0 0.0
    %240 = vmatpush.msra.mxu0 0.0
    %241 = vmatpush.msra.mxu0 0.0
    %242 = vmatpush.msra.mxu0 %v227
    %243 = vmatpush.msra.mxu0 %v226
    %244 = vmatmul.f32.gmra.mxu0 %v90
    %v245 = vpop.f32.mrf.mxu0
    %v246 = vadd.f32 0.0, %v245
    %247 = vdwg.mxu0
    %v249 = vsel %vm88, %v246, 0
    %251 = vmatpush.msra.mxu0 0.0
    %252 = vmatpush.msra.mxu0 0.0
    %253 = vmatpush.msra.mxu0 0.0
    %254 = vmatpush.msra.mxu0 0.0
    %255 = vmatpush.msra.mxu0 0.0
    %256 = vmatpush.msra.mxu0 0.0
    %257 = vmatpush.msra.mxu0 0.0
    %258 = vmatpush.msra.mxu0 0.0
    %259 = vmatpush.msra.mxu0 0.0
    %260 = vmatpush.msra.mxu0 0.0
    %261 = vmatpush.msra.mxu0 0.0
    %262 = vmatpush.msra.mxu0 0.0
    %263 = vmatpush.msra.mxu0 0.0
    %264 = vmatpush.msra.mxu0 0.0
    %265 = vmatpush.msra.mxu0 %v61
    %266 = vmatpush.msra.mxu0 %v60
    %267 = vmatmul.f32.gmra.mxu0 %v249
    %v268 = vpop.f32.mrf.mxu0
    %v269 = vadd.f32 0.0, %v268
    %270 = vdwg.mxu0
    %v271 = vmul.f32 %v269, 0.008264462
    %v272 = vmul.f32 %v84, %v86
    %v273 = vmul.f32 %v85, %v87
    %274 = vmatpush.msra.mxu0 0.0
    %275 = vmatpush.msra.mxu0 0.0
    %276 = vmatpush.msra.mxu0 0.0
    %277 = vmatpush.msra.mxu0 0.0
    %278 = vmatpush.msra.mxu0 0.0
    %279 = vmatpush.msra.mxu0 0.0
    %280 = vmatpush.msra.mxu0 0.0
    %281 = vmatpush.msra.mxu0 0.0
    %282 = vmatpush.msra.mxu0 0.0
    %283 = vmatpush.msra.mxu0 0.0
    %284 = vmatpush.msra.mxu0 0.0
    %285 = vmatpush.msra.mxu0 0.0
    %286 = vmatpush.msra.mxu0 0.0
    %287 = vmatpush.msra.mxu0 0.0
    %288 = vmatpush.msra.mxu0 %v273
    %289 = vmatpush.msra.mxu0 %v272
    %290 = vmatmul.f32.gmra.mxu0 %v90
    %v291 = vpop.f32.mrf.mxu0
    %v292 = vadd.f32 0.0, %v291
    %293 = vdwg.mxu0
    %v295 = vsel %vm88, %v292, 0
    %297 = vmatpush.msra.mxu0 0.0
    %298 = vmatpush.msra.mxu0 0.0
    %299 = vmatpush.msra.mxu0 0.0
    %300 = vmatpush.msra.mxu0 0.0
    %301 = vmatpush.msra.mxu0 0.0
    %302 = vmatpush.msra.mxu0 0.0
    %303 = vmatpush.msra.mxu0 0.0
    %304 = vmatpush.msra.mxu0 0.0
    %305 = vmatpush.msra.mxu0 0.0
    %306 = vmatpush.msra.mxu0 0.0
    %307 = vmatpush.msra.mxu0 0.0
    %308 = vmatpush.msra.mxu0 0.0
    %309 = vmatpush.msra.mxu0 0.0
    %310 = vmatpush.msra.mxu0 0.0
    %311 = vmatpush.msra.mxu0 %v61
    %312 = vmatpush.msra.mxu0 %v60
    %313 = vmatmul.f32.gmra.mxu0 %v295
    %v314 = vpop.f32.mrf.mxu0
    %v315 = vadd.f32 0.0, %v314
    %316 = vdwg.mxu0
    %v317 = vmul.f32 %v315, 0.008264462
    %v318 = vmul.f32 %v135, %v135
    %v319 = vsub.f32 %v225, %v318
    %v320 = vmul.f32 %v319, 1.0083333
    %v321 = vmul.f32 %v179, %v179
    %v322 = vsub.f32 %v271, %v321
    %v323 = vmul.f32 %v322, 1.0083333
    %v324 = vmul.f32 %v135, %v179
    %v325 = vsub.f32 %v317, %v324
    %v326 = vmul.f32 %v325, 1.0083333
    %v327 = vmul.f32 %v135, 2.0
    %v328 = vmul.f32 %v327, %v179
    %v329 = vstv %s81
    %v330 = vadd.f32 %v328, %v329
    %v331 = vmul.f32 %v326, 2.0
    %v332 = vstv %s83
    %v333 = vadd.f32 %v331, %v332
    %v334 = vadd.f32 %v318, %v321
    %v335 = vadd.f32 %v334, %v329
    %v336 = vadd.f32 %v320, %v323
    %v337 = vadd.f32 %v336, %v332
    %v338 = vmul.f32 %v330, %v333
    %v339 = vmul.f32 %v335, %v337
    %v340 = vrcp.pop %v339
    %v341 = vmul.f32 %v339, %v340
    %v342 = vsub.f32 1.0, %v341
    %v343 = vmul.f32 %v340, %v342
    %v344 = vadd.f32 %v340, %v343
    %vm345 = vweird.f32 %v339
    %vm346 = vweird.f32 %v340
    %vm347 = vmor %vm345, %vm346
    %v348 = vsel %vm347, %v340, %v344
    %v349 = vand.u32 2147483647, %v339
    %vm350 = vcmp.eq.f32.partialorder %v349, 8.507059e+37
    %v351 = vand.u32 %v339, 2147483648
    %v352 = vor.u32 1.1754944e-38, %v351
    %v353 = vsel %vm350, %v352, %v348
    %v354 = vmul.f32 %v338, %v353
    %vm355 = vcmask 46080
    %v356 = vsel %vm355, %v354, 0.0
    %357 = vadd.xlane.f32.xlu0 %v356
    %v358 = vpop.xlane.xlu0 %357
    %v359 = vrot.slane %v358, 4
    %v360 = vadd.f32 %v358, %v359
    %v361 = vrot.slane %v360, 2
    %v362 = vadd.f32 %v360, %v361
    %v363 = vrot.slane %v362, 1
    %v364 = vadd.f32 %v362, %v363
    %s365 = vtos %v364
    %v366 = vsub.f32 %v84, %v86
    %v367 = vsub.f32 %v85, %v87
    %v368 = vand.u32 2147483647, %v366
    %v369 = vand.u32 2147483647, %v367
    %v370 = vsel %vm88, %v368, 0.0
    %v371 = vsel %vm88, %v369, 0.0
    %v372 = vadd.f32 %v370, %v371
    %373 = vadd.xlane.f32.xlu0 %v372
    %v374 = vpop.xlane.xlu0 %373
    %v375 = vrot.slane %v374, 4
    %v376 = vadd.f32 %v374, %v375
    %v377 = vrot.slane %v376, 2
    %v378 = vadd.f32 %v376, %v377
    %v379 = vrot.slane %v378, 1
    %v380 = vadd.f32 %v378, %v379
    %s381 = vtos %v380
    %s382 = smul.f32 %s79, %s381
    %s383 = sadd.f32 %s365, 0.0
    %s384 = sadd.f32 %s382, 0.0
    %s385 = sadd.s32 %s62, 1
    %s386 = sld [smem:[#allocation3 + %s385]]
    %v387 = vstv %s386
    %v388 = vrcp.pop %v387
    %v389 = vmul.f32 %v387, %v388
    %v390 = vsub.f32 1.0, %v389
    %v391 = vmul.f32 %v388, %v390
    %v392 = vadd.f32 %v388, %v391
    %vm393 = vweird.f32 %v387
    %vm394 = vweird.f32 %v388
    %vm395 = vmor %vm393, %vm394
    %v396 = vsel %vm395, %v388, %v392
    %v397 = vand.u32 2147483647, %v387
    %vm398 = vcmp.eq.f32.partialorder %v397, 8.507059e+37
    %v399 = vand.u32 %v387, 2147483648
    %v400 = vor.u32 1.1754944e-38, %v399
    %v401 = vsel %vm398, %v400, %v396
    %s402 = vtos %v401
    %s403 = smul.f32 %s386, 0.01
    %s404 = smul.f32 %s403, %s403
    %s405 = smul.f32 %s386, 0.03
    %s406 = smul.f32 %s405, %s405
    %s407 = scalar_lea.vmem [#allocation4], 16
    %v408 = vld [vmem:[%s407] sm:$0xff]
    %v409 = vld [vmem:[%s407 + $0x8] sm:$0xff]
    %s410 = scalar_lea.vmem [#allocation7], 16
    %v411 = vld [vmem:[%s410] sm:$0xff]
    %v412 = vld [vmem:[%s410 + $0x8] sm:$0xff]
    %413 = vmatpush.msra.mxu0 0.0
    %414 = vmatpush.msra.mxu0 0.0
    %415 = vmatpush.msra.mxu0 0.0
    %416 = vmatpush.msra.mxu0 0.0
    %417 = vmatpush.msra.mxu0 0.0
    %418 = vmatpush.msra.mxu0 0.0
    %419 = vmatpush.msra.mxu0 0.0
    %420 = vmatpush.msra.mxu0 0.0
    %421 = vmatpush.msra.mxu0 0.0
    %422 = vmatpush.msra.mxu0 0.0
    %423 = vmatpush.msra.mxu0 0.0
    %424 = vmatpush.msra.mxu0 0.0
    %425 = vmatpush.msra.mxu0 0.0
    %426 = vmatpush.msra.mxu0 0.0
    %427 = vmatpush.msra.mxu0 %v409
    %428 = vmatpush.msra.mxu0 %v408
    %429 = vmatmul.f32.gmra.mxu0 %v90
    %v430 = vpop.f32.mrf.mxu0
    %v431 = vadd.f32 0.0, %v430
    %432 = vdwg.mxu0
    %v434 = vsel %vm88, %v431, 0
    %436 = vmatpush.msra.mxu0 0.0
    %437 = vmatpush.msra.mxu0 0.0
    %438 = vmatpush.msra.mxu0 0.0
    %439 = vmatpush.msra.mxu0 0.0
    %440 = vmatpush.msra.mxu0 0.0
    %441 = vmatpush.msra.mxu0 0.0
    %442 = vmatpush.msra.mxu0 0.0
    %443 = vmatpush.msra.mxu0 0.0
    %444 = vmatpush.msra.mxu0 0.0
    %445 = vmatpush.msra.mxu0 0.0
    %446 = vmatpush.msra.mxu0 0.0
    %447 = vmatpush.msra.mxu0 0.0
    %448 = vmatpush.msra.mxu0 0.0
    %449 = vmatpush.msra.mxu0 0.0
    %450 = vmatpush.msra.mxu0 %v61
    %451 = vmatpush.msra.mxu0 %v60
    %452 = vmatmul.f32.gmra.mxu0 %v434
    %v453 = vpop.f32.mrf.mxu0
    %v454 = vadd.f32 0.0, %v453
    %455 = vdwg.mxu0
    %v456 = vmul.f32 %v454, 0.008264462
    %457 = vmatpush.msra.mxu0 0.0
    %458 = vmatpush.msra.mxu0 0.0
    %459 = vmatpush.msra.mxu0 0.0
    %460 = vmatpush.msra.mxu0 0.0
    %461 = vmatpush.msra.mxu0 0.0
    %462 = vmatpush.msra.mxu0 0.0
    %463 = vmatpush.msra.mxu0 0.0
    %464 = vmatpush.msra.mxu0 0.0
    %465 = vmatpush.msra.mxu0 0.0
    %466 = vmatpush.msra.mxu0 0.0
    %467 = vmatpush.msra.mxu0 0.0
    %468 = vmatpush.msra.mxu0 0.0
    %469 = vmatpush.msra.mxu0 0.0
    %470 = vmatpush.msra.mxu0 0.0
    %471 = vmatpush.msra.mxu0 %v412
    %472 = vmatpush.msra.mxu0 %v411
    %473 = vmatmul.f32.gmra.mxu0 %v90
    %v474 = vpop.f32.mrf.mxu0
    %v475 = vadd.f32 0.0, %v474
    %476 = vdwg.mxu0
    %v478 = vsel %vm88, %v475, 0
    %480 = vmatpush.msra.mxu0 0.0
    %481 = vmatpush.msra.mxu0 0.0
    %482 = vmatpush.msra.mxu0 0.0
    %483 = vmatpush.msra.mxu0 0.0
    %484 = vmatpush.msra.mxu0 0.0
    %485 = vmatpush.msra.mxu0 0.0
    %486 = vmatpush.msra.mxu0 0.0
    %487 = vmatpush.msra.mxu0 0.0
    %488 = vmatpush.msra.mxu0 0.0
    %489 = vmatpush.msra.mxu0 0.0
    %490 = vmatpush.msra.mxu0 0.0
    %491 = vmatpush.msra.mxu0 0.0
    %492 = vmatpush.msra.mxu0 0.0
    %493 = vmatpush.msra.mxu0 0.0
    %494 = vmatpush.msra.mxu0 %v61
    %495 = vmatpush.msra.mxu0 %v60
    %496 = vmatmul.f32.gmra.mxu0 %v478
    %v497 = vpop.f32.mrf.mxu0
    %v498 = vadd.f32 0.0, %v497
    %499 = vdwg.mxu0
    %v500 = vmul.f32 %v498, 0.008264462
    %v501 = vmul.f32 %v408, %v408
    %v502 = vmul.f32 %v409, %v409
    %503 = vmatpush.msra.mxu0 0.0
    %504 = vmatpush.msra.mxu0 0.0
    %505 = vmatpush.msra.mxu0 0.0
    %506 = vmatpush.msra.mxu0 0.0
    %507 = vmatpush.msra.mxu0 0.0
    %508 = vmatpush.msra.mxu0 0.0
    %509 = vmatpush.msra.mxu0 0.0
    %510 = vmatpush.msra.mxu0 0.0
    %511 = vmatpush.msra.mxu0 0.0
    %512 = vmatpush.msra.mxu0 0.0
    %513 = vmatpush.msra.mxu0 0.0
    %514 = vmatpush.msra.mxu0 0.0
    %515 = vmatpush.msra.mxu0 0.0
    %516 = vmatpush.msra.mxu0 0.0
    %517 = vmatpush.msra.mxu0 %v502
    %518 = vmatpush.msra.mxu0 %v501
    %519 = vmatmul.f32.gmra.mxu0 %v90
    %v520 = vpop.f32.mrf.mxu0
    %v521 = vadd.f32 0.0, %v520
    %522 = vdwg.mxu0
    %v524 = vsel %vm88, %v521, 0
    %526 = vmatpush.msra.mxu0 0.0
    %527 = vmatpush.msra.mxu0 0.0
    %528 = vmatpush.msra.mxu0 0.0
    %529 = vmatpush.msra.mxu0 0.0
    %530 = vmatpush.msra.mxu0 0.0
    %531 = vmatpush.msra.mxu0 0.0
    %532 = vmatpush.msra.mxu0 0.0
    %533 = vmatpush.msra.mxu0 0.0
    %534 = vmatpush.msra.mxu0 0.0
    %535 = vmatpush.msra.mxu0 0.0
    %536 = vmatpush.msra.mxu0 0.0
    %537 = vmatpush.msra.mxu0 0.0
    %538 = vmatpush.msra.mxu0 0.0
    %539 = vmatpush.msra.mxu0 0.0
    %540 = vmatpush.msra.mxu0 %v61
    %541 = vmatpush.msra.mxu0 %v60
    %542 = vmatmul.f32.gmra.mxu0 %v524
    %v543 = vpop.f32.mrf.mxu0
    %v544 = vadd.f32 0.0, %v543
    %545 = vdwg.mxu0
    %v546 = vmul.f32 %v544, 0.008264462
    %v547 = vmul.f32 %v411, %v411
    %v548 = vmul.f32 %v412, %v412
    %549 = vmatpush.msra.mxu0 0.0
    %550 = vmatpush.msra.mxu0 0.0
    %551 = vmatpush.msra.mxu0 0.0
    %552 = vmatpush.msra.mxu0 0.0
    %553 = vmatpush.msra.mxu0 0.0
    %554 = vmatpush.msra.mxu0 0.0
    %555 = vmatpush.msra.mxu0 0.0
    %556 = vmatpush.msra.mxu0 0.0
    %557 = vmatpush.msra.mxu0 0.0
    %558 = vmatpush.msra.mxu0 0.0
    %559 = vmatpush.msra.mxu0 0.0
    %560 = vmatpush.msra.mxu0 0.0
    %561 = vmatpush.msra.mxu0 0.0
    %562 = vmatpush.msra.mxu0 0.0
    %563 = vmatpush.msra.mxu0 %v548
    %564 = vmatpush.msra.mxu0 %v547
    %565 = vmatmul.f32.gmra.mxu0 %v90
    %v566 = vpop.f32.mrf.mxu0
    %v567 = vadd.f32 0.0, %v566
    %568 = vdwg.mxu0
    %v570 = vsel %vm88, %v567, 0
    %572 = vmatpush.msra.mxu0 0.0
    %573 = vmatpush.msra.mxu0 0.0
    %574 = vmatpush.msra.mxu0 0.0
    %575 = vmatpush.msra.mxu0 0.0
    %576 = vmatpush.msra.mxu0 0.0
    %577 = vmatpush.msra.mxu0 0.0
    %578 = vmatpush.msra.mxu0 0.0
    %579 = vmatpush.msra.mxu0 0.0
    %580 = vmatpush.msra.mxu0 0.0
    %581 = vmatpush.msra.mxu0 0.0
    %582 = vmatpush.msra.mxu0 0.0
    %583 = vmatpush.msra.mxu0 0.0
    %584 = vmatpush.msra.mxu0 0.0
    %585 = vmatpush.msra.mxu0 0.0
    %586 = vmatpush.msra.mxu0 %v61
    %587 = vmatpush.msra.mxu0 %v60
    %588 = vmatmul.f32.gmra.mxu0 %v570
    %v589 = vpop.f32.mrf.mxu0
    %v590 = vadd.f32 0.0, %v589
    %591 = vdwg.mxu0
    %v592 = vmul.f32 %v590, 0.008264462
    %v593 = vmul.f32 %v408, %v411
    %v594 = vmul.f32 %v409, %v412
    %595 = vmatpush.msra.mxu0 0.0
    %596 = vmatpush.msra.mxu0 0.0
    %597 = vmatpush.msra.mxu0 0.0
    %598 = vmatpush.msra.mxu0 0.0
    %599 = vmatpush.msra.mxu0 0.0
    %600 = vmatpush.msra.mxu0 0.0
    %601 = vmatpush.msra.mxu0 0.0
    %602 = vmatpush.msra.mxu0 0.0
    %603 = vmatpush.msra.mxu0 0.0
    %604 = vmatpush.msra.mxu0 0.0
    %605 = vmatpush.msra.mxu0 0.0
    %606 = vmatpush.msra.mxu0 0.0
    %607 = vmatpush.msra.mxu0 0.0
    %608 = vmatpush.msra.mxu0 0.0
    %609 = vmatpush.msra.mxu0 %v594
    %610 = vmatpush.msra.mxu0 %v593
    %611 = vmatmul.f32.gmra.mxu0 %v90
    %v612 = vpop.f32.mrf.mxu0
    %v613 = vadd.f32 0.0, %v612
    %614 = vdwg.mxu0
    %v616 = vsel %vm88, %v613, 0
    %618 = vmatpush.msra.mxu0 0.0
    %619 = vmatpush.msra.mxu0 0.0
    %620 = vmatpush.msra.mxu0 0.0
    %621 = vmatpush.msra.mxu0 0.0
    %622 = vmatpush.msra.mxu0 0.0
    %623 = vmatpush.msra.mxu0 0.0
    %624 = vmatpush.msra.mxu0 0.0
    %625 = vmatpush.msra.mxu0 0.0
    %626 = vmatpush.msra.mxu0 0.0
    %627 = vmatpush.msra.mxu0 0.0
    %628 = vmatpush.msra.mxu0 0.0
    %629 = vmatpush.msra.mxu0 0.0
    %630 = vmatpush.msra.mxu0 0.0
    %631 = vmatpush.msra.mxu0 0.0
    %632 = vmatpush.msra.mxu0 %v61
    %633 = vmatpush.msra.mxu0 %v60
    %634 = vmatmul.f32.gmra.mxu0 %v616
    %v635 = vpop.f32.mrf.mxu0
    %v636 = vadd.f32 0.0, %v635
    %637 = vdwg.mxu0
    %v638 = vmul.f32 %v636, 0.008264462
    %v639 = vmul.f32 %v456, %v456
    %v640 = vsub.f32 %v546, %v639
    %v641 = vmul.f32 %v640, 1.0083333
    %v642 = vmul.f32 %v500, %v500
    %v643 = vsub.f32 %v592, %v642
    %v644 = vmul.f32 %v643, 1.0083333
    %v645 = vmul.f32 %v456, %v500
    %v646 = vsub.f32 %v638, %v645
    %v647 = vmul.f32 %v646, 1.0083333
    %v648 = vmul.f32 %v456, 2.0
    %v649 = vmul.f32 %v648, %v500
    %v650 = vstv %s404
    %v651 = vadd.f32 %v649, %v650
    %v652 = vmul.f32 %v647, 2.0
    %v653 = vstv %s406
    %v654 = vadd.f32 %v652, %v653
    %v655 = vadd.f32 %v639, %v642
    %v656 = vadd.f32 %v655, %v650
    %v657 = vadd.f32 %v641, %v644
    %v658 = vadd.f32 %v657, %v653
    %v659 = vmul.f32 %v651, %v654
    %v660 = vmul.f32 %v656, %v658
    %v661 = vrcp.pop %v660
    %v662 = vmul.f32 %v660, %v661
    %v663 = vsub.f32 1.0, %v662
    %v664 = vmul.f32 %v661, %v663
    %v665 = vadd.f32 %v661, %v664
    %vm666 = vweird.f32 %v660
    %vm667 = vweird.f32 %v661
    %vm668 = vmor %vm666, %vm667
    %v669 = vsel %vm668, %v661, %v665
    %v670 = vand.u32 2147483647, %v660
    %vm671 = vcmp.eq.f32.partialorder %v670, 8.507059e+37
    %v672 = vand.u32 %v660, 2147483648
    %v673 = vor.u32 1.1754944e-38, %v672
    %v674 = vsel %vm671, %v673, %v669
    %v675 = vmul.f32 %v659, %v674
    %v676 = vsel %vm355, %v675, 0.0
    %677 = vadd.xlane.f32.xlu0 %v676
    %v678 = vpop.xlane.xlu0 %677
    %v679 = vrot.slane %v678, 4
    %v680 = vadd.f32 %v678, %v679
    %v681 = vrot.slane %v680, 2
    %v682 = vadd.f32 %v680, %v681
    %v683 = vrot.slane %v682, 1
    %v684 = vadd.f32 %v682, %v683
    %s685 = vtos %v684
    %v686 = vsub.f32 %v408, %v411
    %v687 = vsub.f32 %v409, %v412
    %v688 = vand.u32 2147483647, %v686
    %v689 = vand.u32 2147483647, %v687
    %v690 = vsel %vm88, %v688, 0.0
    %v691 = vsel %vm88, %v689, 0.0
    %v692 = vadd.f32 %v690, %v691
    %693 = vadd.xlane.f32.xlu0 %v692
    %v694 = vpop.xlane.xlu0 %693
    %v695 = vrot.slane %v694, 4
    %v696 = vadd.f32 %v694, %v695
    %v697 = vrot.slane %v696, 2
    %v698 = vadd.f32 %v696, %v697
    %v699 = vrot.slane %v698, 1
    %v700 = vadd.f32 %v698, %v699
    %s701 = vtos %v700
    %s702 = smul.f32 %s402, %s701
    %s703 = sadd.f32 %s383, %s685
    %s704 = sadd.f32 %s384, %s702
    %v705 = vlaneseq
    %v706 = vshrl.u32 %v705, 7
    %vm707 = vcmp.eq.s32.totalorder %v706, 0
    %v708 = vstv %s703
    %v709 = vsel %vm707, %v708, 0.0
    %vm710 = vcmp.eq.s32.totalorder %v706, 1
    %v711 = vstv %s704
    %v712 = vsel %vm710, %v711, 0.0
    %v713 = vadd.f32 %v709, %v712
    %714 = vst [vmem:[#allocation9] sm:$0xff] %v713
    // Predicated region
    $region26: #{tpu_custom_call.1} parent=1 // pred_check
      _
    $region27: #{tpu_custom_call.1} parent=1 // pred_check_branch
      %716 = sbr.rel (0) target = $region29
    $region28: #{tpu_custom_call.1} parent=1 // pred_region
      %718 = vsyncadd [#allocation6], 0
      %s720 = sshll.u32 [#allocation9], 4
      %s721 = int_to_ptr.vmem [resolvable:$true] %s720
      %s722 = sshll.u32 %s5, 4
      %s723 = int_to_ptr.hbm [resolvable:$true] %s722
      %725 = dma.vmem_to_hbm [thread:$0]  %s721, 128, %s723, [#allocation6]
    $region29: #{tpu_custom_call.1} parent=1 // pred_fallthru
      _
    // Predicated region
    $region30: #{tpu_custom_call.1} parent=1 // pred_check
      _
    $region31: #{tpu_custom_call.1} parent=1 // pred_check_branch
      %727 = sbr.rel (0) target = $region33
    $region32: #{tpu_custom_call.1} parent=1 // pred_region
      %729 = dma.done [#allocation6], 128
    $region33: #{tpu_custom_call.1} parent=1 // pred_fallthru
      _
    %730 = vsyncpa [#allocation5], 1
    %731 = vsyncpa [#allocation8], 1
    %732 = vsyncpa [#allocation6], 1

</llo_original>
